<compile_context>
chip_gen: v7x
topology: tpu7x:2x2x1
jax: 0.10.0
libtpu: 0.0.40
codegen_flags: <defaults>
</compile_context>

<pallas_src>
import functools

import jax
import jax.numpy as jnp
from jax.experimental import pallas as pl
from jax.experimental.pallas import tpu as pltpu

KH = KW = 3              # conv kernel (padding=1 -> "SAME")
C_IN = 3
C_OUT = 16
OUT_DIM = 4
KK = KH * KW * C_IN      # 27 im2col rows
OUT_PAD = 128            # lane-padded staging width for the tiny FC output
LANE = 128
MAX_CHUNK = 2048         # max lanes per in-kernel conv-matmul chunk
MAX_BT = 8               # max batch elements folded into one grid step
VMEM_BUDGET = 4 << 20    # per-step input-block budget used to cap the fold


def _round_up(x, m):
    return ((x + m - 1) // m) * m


def _largest_div_tile(total, cap):
    """Largest multiple of LANE dividing `total` (a multiple of LANE), <= cap."""
    t = min(total, cap)
    t -= t % LANE
    while total % t != 0:
        t -= LANE
    return t


def _augparam_kernel(x_ref, wt_ref, bconv_ref, wfc_ref, bfc_ref, mask_ref, o_ref,
                     *, bt, n_chunks, ch, offsets, inv_hw):
    """One grid step = `bt` batch elements, whole image each.

    x_ref     : (bt, C_IN, L)      zero-padded, flattened, lane-padded images
    wt_ref    : (C_OUT, KK)        conv weight, rows ordered (dy, dx, cin)
    bconv_ref : (C_OUT, 1)         conv bias
    wfc_ref   : (C_OUT, OUT_PAD)   zero-padded FC weight
    bfc_ref   : (1, OUT_PAD)       zero-padded FC bias
    mask_ref  : (1, S)             1.0 at valid output positions, else 0.0
    o_ref     : (1, bt, OUT_PAD)   lane-padded output rows for this fold
    """
    for b in range(bt):                               # static unroll (bt <= 8)
        pooled = jnp.zeros((C_OUT, 1), jnp.float32)
        # TODO(synk): for very large H*W this static chunk loop should become a
        # lax.fori_loop / spatial grid axis with halo DMA to bound code size.
        for c in range(n_chunks):
            base = c * ch
            # Fused im2col: 9 shifted lane slices -> (KK, ch) patch tile in VMEM.
            cols = [x_ref[b, :, pl.ds(base + off, ch)] for off in offsets]
            patches = jnp.concatenate(cols, axis=0)               # (KK, ch)
            # Conv2d(3x3, SAME) for this chunk as ONE lane-dense matmul.
            conv = jnp.dot(wt_ref[...], patches,
                           preferred_element_type=jnp.float32)    # (C_OUT, ch)
            act = jnp.maximum(conv + bconv_ref[...], 0.0)         # bias + ReLU
            act = act * mask_ref[:, pl.ds(base, ch)]              # kill pad cols
            pooled = pooled + jnp.sum(act, axis=-1, keepdims=True)
        pooled = pooled * inv_hw                                  # avg-pool
        # Linear(16 -> 4) on the VPU; columns >= OUT_DIM are zero (sliced off
        # in the wrapper).
        row = (jnp.sum(pooled * wfc_ref[...], axis=0, keepdims=True)
               + bfc_ref[...])                                    # (1, OUT_PAD)
        o_ref[0, pl.ds(b, 1), :] = row.astype(o_ref.dtype)


@jax.jit
def augparam_forward(x_nchw, w_conv, b_conv, w_fc, b_fc):
    """x: (B,3,H,W) NCHW, w_conv: (3,3,3,16) HWIO, b_conv: (16,),
    w_fc: (16,4), b_fc: (4,). Returns (B, 4)."""
    B, C, H, W = x_nchw.shape
    assert C == C_IN
    Hp, Wp = H + 2, W + 2
    hw = H * W

    # Flat-index geometry: output pixel (y, x) has im2col element (dy, dx) at
    # flat position y*Wp + x + dy*Wp + dx in the padded, row-flattened image.
    S = _round_up(H * Wp, LANE)          # evaluated positions (lane padded)
    max_off = 2 * Wp + 2
    L = _round_up(S + max_off, LANE)     # per-(b,c) flattened row length
    ch = _largest_div_tile(S, MAX_CHUNK)
    n_chunks = S // ch

    # Batch folding: big enough steps, but keep >=2 steps when B >= 2 so the
    # two v7x TensorCores both get (balanced) work.
    per_elem_bytes = C_IN * L * 4
    bt = min(B, MAX_BT, max(1, VMEM_BUDGET // per_elem_bytes))
    if B >= 2:
        bt = min(bt, (B + 1) // 2)
    n_groups = -(-B // bt)
    b_pad = n_groups * bt

    # Layout plumbing (fused by XLA around the kernel): SAME-pad + batch-pad,
    # flatten spatial dims, lane-pad the flat axis.
    x_pad = jnp.pad(x_nchw, ((0, b_pad - B), (0, 0), (1, 1), (1, 1)))
    xflat = x_pad.reshape(b_pad, C_IN, Hp * Wp)
    xflat = jnp.pad(xflat, ((0, 0), (0, 0), (0, L - Hp * Wp)))

    # Weight repack: HWIO -> (C_OUT, KK), row order (dy, dx, cin) matches the
    # offset order used in the kernel.
    w_t = w_conv.reshape(KK, C_OUT).T.astype(jnp.float32)
    b_c = b_conv.reshape(C_OUT, 1).astype(jnp.float32)
    w_fc_pad = jnp.zeros((C_OUT, OUT_PAD), jnp.float32).at[:, :OUT_DIM].set(w_fc)
    b_fc_pad = jnp.zeros((1, OUT_PAD), jnp.float32).at[:, :OUT_DIM].set(
        b_fc.reshape(1, OUT_DIM))

    # Valid-position mask over the S evaluated flat positions: drop the 2 pad
    # columns of each image row and the lane padding beyond H*Wp.
    s_idx = jnp.arange(S)
    mask = (((s_idx % Wp) < W) & (s_idx < H * Wp)).astype(jnp.float32)
    mask = mask.reshape(1, S)

    offsets = tuple(dy * Wp + dx for dy in range(KH) for dx in range(KW))

    grid_spec = pltpu.PrefetchScalarGridSpec(
        num_scalar_prefetch=0,
        grid=(n_groups,),
        in_specs=[
            pl.BlockSpec((bt, C_IN, L), lambda g: (g, 0, 0)),
            pl.BlockSpec((C_OUT, KK), lambda g: (0, 0)),
            pl.BlockSpec((C_OUT, 1), lambda g: (0, 0)),
            pl.BlockSpec((C_OUT, OUT_PAD), lambda g: (0, 0)),
            pl.BlockSpec((1, OUT_PAD), lambda g: (0, 0)),
            pl.BlockSpec((1, S), lambda g: (0, 0)),
        ],
        out_specs=pl.BlockSpec((1, bt, OUT_PAD), lambda g: (g, 0, 0)),
    )

    flops = 2 * b_pad * S * KK * C_OUT + 2 * b_pad * C_OUT * OUT_DIM
    bytes_accessed = 4 * (b_pad * C_IN * L + b_pad * OUT_PAD
                          + C_OUT * (KK + 1 + OUT_PAD) + OUT_PAD + S)
    cost = pl.CostEstimate(flops=flops, transcendentals=0,
                           bytes_accessed=bytes_accessed)

    out_padded = pl.pallas_call(
        functools.partial(_augparam_kernel, bt=bt, n_chunks=n_chunks, ch=ch,
                          offsets=offsets, inv_hw=1.0 / hw),
        out_shape=jax.ShapeDtypeStruct((n_groups, bt, OUT_PAD), jnp.float32),
        grid_spec=grid_spec,
        compiler_params=pltpu.CompilerParams(
            dimension_semantics=("parallel",),
            vmem_limit_bytes=32 * 1024 * 1024,
        ),
        cost_estimate=cost,
    )(xflat, w_t, b_c, w_fc_pad, b_fc_pad, mask)

    return out_padded.reshape(b_pad, OUT_PAD)[:B, :OUT_DIM]


def ref_forward(x_nchw, w_conv, b_conv, w_fc, b_fc):
    """Pure-JAX reference (matches the PyTorch module semantics)."""
    x_nhwc = jnp.transpose(x_nchw, (0, 2, 3, 1))
    y = jax.lax.conv_general_dilated(
        x_nhwc, w_conv, window_strides=(1, 1), padding="SAME",
        dimension_numbers=("NHWC", "HWIO", "NHWC"))
    y = jnp.maximum(y + b_conv.reshape(1, 1, 1, -1), 0.0)
    pooled = jnp.mean(y, axis=(1, 2))            # AdaptiveAvgPool2d(1) + squeeze
    return pooled @ w_fc + b_fc.reshape(1, -1)   # Linear


if __name__ == "__main__":
    key = jax.random.PRNGKey(0)
    k_x, k_wc, k_bc, k_wf, k_bf, k_x2, k_x3 = jax.random.split(key, 7)

    # Deterministic synthetic parameters (shapes implied by the module).
    w_conv = 0.1 * jax.random.normal(k_wc, (KH, KW, C_IN, C_OUT), jnp.float32)
    b_conv = 0.1 * jax.random.normal(k_bc, (C_OUT,), jnp.float32)
    w_fc = 0.1 * jax.random.normal(k_wf, (C_OUT, OUT_DIM), jnp.float32)
    b_fc = 0.1 * jax.random.normal(k_bf, (OUT_DIM,), jnp.float32)

    # Test 1: B=2, 16x16 -> two grid steps of one image each (2-TC friendly).
    B, H, W = 2, 16, 16
    x = jax.random.normal(k_x, (B, C_IN, H, W), dtype=jnp.float32)
    out = jax.block_until_ready(augparam_forward(x, w_conv, b_conv, w_fc, b_fc))
    ref = ref_forward(x, w_conv, b_conv, w_fc, b_fc)
    assert out.shape == (B, OUT_DIM)
    assert jnp.allclose(out, ref, atol=1e-3, rtol=1e-3), (out, ref)

    # Test 2: B=3, 32x32 -> batch fold of 2 with one padded element (balanced
    # 2-step grid), exercises the fused im2col + mask on a bigger image.
    B2, H2, W2 = 3, 32, 32
    x2 = jax.random.normal(k_x2, (B2, C_IN, H2, W2), dtype=jnp.float32)
    out2 = jax.block_until_ready(augparam_forward(x2, w_conv, b_conv, w_fc, b_fc))
    ref2 = ref_forward(x2, w_conv, b_conv, w_fc, b_fc)
    assert out2.shape == (B2, OUT_DIM)
    assert jnp.allclose(out2, ref2, atol=1e-3, rtol=1e-3), (out2, ref2)

    # Test 3: non-square, non-power-of-two spatial dims -> exercises the
    # lane-padding / invalid-column masking path.
    B3, H3, W3 = 1, 15, 20
    x3 = jax.random.normal(k_x3, (B3, C_IN, H3, W3), dtype=jnp.float32)
    out3 = jax.block_until_ready(augparam_forward(x3, w_conv, b_conv, w_fc, b_fc))
    ref3 = ref_forward(x3, w_conv, b_conv, w_fc, b_fc)
    assert out3.shape == (B3, OUT_DIM)
    assert jnp.allclose(out3, ref3, atol=1e-3, rtol=1e-3), (out3, ref3)

    print("KERNEL_OK")
</pallas_src>

<mosaic_0001>
module attributes {stable_mosaic.version = 11 : i64} {
  func.func @_augparam_kernel(%arg0: i32, %arg1: memref<1x3x512xf32, #tpu.memory_space<vmem>>, %arg2: memref<16x27xf32, #tpu.memory_space<vmem>>, %arg3: memref<16x1xf32, #tpu.memory_space<vmem>>, %arg4: memref<16x128xf32, #tpu.memory_space<vmem>>, %arg5: memref<1x128xf32, #tpu.memory_space<vmem>>, %arg6: memref<1x384xf32, #tpu.memory_space<vmem>>, %arg7: memref<1x1x128xf32, #tpu.memory_space<vmem>>) attributes {dimension_semantics = [#tpu.dimension_semantics<parallel>], iteration_bounds = array<i64: 2>, scalar_prefetch = 0 : i64, scratch_operands = 0 : i64, tpu.core_type = #tpu.core_type<tc>, window_params = [{transform_indices = @transform_0, window_bounds = array<i64: 1, 3, 512>}, {pipeline_mode = #tpu.pipeline_mode<synchronous>, transform_indices = @transform_1, window_bounds = array<i64: 16, 27>}, {pipeline_mode = #tpu.pipeline_mode<synchronous>, transform_indices = @transform_2, window_bounds = array<i64: 16, 1>}, {pipeline_mode = #tpu.pipeline_mode<synchronous>, transform_indices = @transform_3, window_bounds = array<i64: 16, 128>}, {pipeline_mode = #tpu.pipeline_mode<synchronous>, transform_indices = @transform_4, window_bounds = array<i64: 1, 128>}, {pipeline_mode = #tpu.pipeline_mode<synchronous>, transform_indices = @transform_5, window_bounds = array<i64: 1, 384>}, {transform_indices = @transform_6, window_bounds = array<i64: 1, 1, 128>}]} {
    %cst = arith.constant 0.000000e+00 : f32
    %0 = vector.broadcast %cst : f32 to vector<16x1xf32>
    %c0 = arith.constant 0 : index
    %c0_0 = arith.constant 0 : index
    %c0_1 = arith.constant 0 : index
    %1 = vector.load %arg1[%c0, %c0_0, %c0_1] : memref<1x3x512xf32, #tpu.memory_space<vmem>>, vector<1x3x384xf32>
    %2 = vector.shape_cast %1 : vector<1x3x384xf32> to vector<3x384xf32>
    %c0_2 = arith.constant 0 : index
    %c0_3 = arith.constant 0 : index
    %c1 = arith.constant 1 : index
    %3 = vector.load %arg1[%c0_2, %c0_3, %c1] : memref<1x3x512xf32, #tpu.memory_space<vmem>>, vector<1x3x384xf32>
    %4 = vector.shape_cast %3 : vector<1x3x384xf32> to vector<3x384xf32>
    %c0_4 = arith.constant 0 : index
    %c0_5 = arith.constant 0 : index
    %c2 = arith.constant 2 : index
    %5 = vector.load %arg1[%c0_4, %c0_5, %c2] : memref<1x3x512xf32, #tpu.memory_space<vmem>>, vector<1x3x384xf32>
    %6 = vector.shape_cast %5 : vector<1x3x384xf32> to vector<3x384xf32>
    %c0_6 = arith.constant 0 : index
    %c0_7 = arith.constant 0 : index
    %c18 = arith.constant 18 : index
    %7 = vector.load %arg1[%c0_6, %c0_7, %c18] : memref<1x3x512xf32, #tpu.memory_space<vmem>>, vector<1x3x384xf32>
    %8 = vector.shape_cast %7 : vector<1x3x384xf32> to vector<3x384xf32>
    %c0_8 = arith.constant 0 : index
    %c0_9 = arith.constant 0 : index
    %c19 = arith.constant 19 : index
    %9 = vector.load %arg1[%c0_8, %c0_9, %c19] : memref<1x3x512xf32, #tpu.memory_space<vmem>>, vector<1x3x384xf32>
    %10 = vector.shape_cast %9 : vector<1x3x384xf32> to vector<3x384xf32>
    %c0_10 = arith.constant 0 : index
    %c0_11 = arith.constant 0 : index
    %c20 = arith.constant 20 : index
    %11 = vector.load %arg1[%c0_10, %c0_11, %c20] : memref<1x3x512xf32, #tpu.memory_space<vmem>>, vector<1x3x384xf32>
    %12 = vector.shape_cast %11 : vector<1x3x384xf32> to vector<3x384xf32>
    %c0_12 = arith.constant 0 : index
    %c0_13 = arith.constant 0 : index
    %c36 = arith.constant 36 : index
    %13 = vector.load %arg1[%c0_12, %c0_13, %c36] : memref<1x3x512xf32, #tpu.memory_space<vmem>>, vector<1x3x384xf32>
    %14 = vector.shape_cast %13 : vector<1x3x384xf32> to vector<3x384xf32>
    %c0_14 = arith.constant 0 : index
    %c0_15 = arith.constant 0 : index
    %c37 = arith.constant 37 : index
    %15 = vector.load %arg1[%c0_14, %c0_15, %c37] : memref<1x3x512xf32, #tpu.memory_space<vmem>>, vector<1x3x384xf32>
    %16 = vector.shape_cast %15 : vector<1x3x384xf32> to vector<3x384xf32>
    %c0_16 = arith.constant 0 : index
    %c0_17 = arith.constant 0 : index
    %c38 = arith.constant 38 : index
    %17 = vector.load %arg1[%c0_16, %c0_17, %c38] : memref<1x3x512xf32, #tpu.memory_space<vmem>>, vector<1x3x384xf32>
    %18 = vector.shape_cast %17 : vector<1x3x384xf32> to vector<3x384xf32>
    %19 = tpu.concatenate %2, %4, %6, %8, %10, %12, %14, %16, %18 in 0 : vector<3x384xf32>, vector<3x384xf32>, vector<3x384xf32>, vector<3x384xf32>, vector<3x384xf32>, vector<3x384xf32>, vector<3x384xf32>, vector<3x384xf32>, vector<3x384xf32> -> vector<27x384xf32>
    %c0_18 = arith.constant 0 : index
    %c0_19 = arith.constant 0 : index
    %20 = vector.load %arg2[%c0_18, %c0_19] : memref<16x27xf32, #tpu.memory_space<vmem>>, vector<16x27xf32>
    %cst_20 = arith.constant dense<0.000000e+00> : vector<16x384xf32>
    %21 = tpu.matmul %20, %19, %cst_20 {dimension_numbers = #tpu.dot_dimension_numbers<[1], [0], [0], [1], [0, 0, 1, 1], [], []>} : vector<16x27xf32>, vector<27x384xf32>, vector<16x384xf32> -> vector<16x384xf32>
    %c0_21 = arith.constant 0 : index
    %c0_22 = arith.constant 0 : index
    %22 = vector.load %arg3[%c0_21, %c0_22] : memref<16x1xf32, #tpu.memory_space<vmem>>, vector<16x1xf32>
    %23 = vector.broadcast %22 : vector<16x1xf32> to vector<16x384xf32>
    %24 = arith.addf %21, %23 : vector<16x384xf32>
    %cst_23 = arith.constant 0.000000e+00 : f32
    %25 = vector.broadcast %cst_23 : f32 to vector<16x384xf32>
    %26 = arith.maximumf %24, %25 : vector<16x384xf32>
    %c0_24 = arith.constant 0 : index
    %c0_25 = arith.constant 0 : index
    %27 = vector.load %arg6[%c0_24, %c0_25] : memref<1x384xf32, #tpu.memory_space<vmem>>, vector<1x384xf32>
    %28 = vector.broadcast %27 : vector<1x384xf32> to vector<16x384xf32>
    %29 = arith.mulf %26, %28 : vector<16x384xf32>
    %cst_26 = arith.constant dense<0.000000e+00> : vector<16xf32>
    %30 = vector.multi_reduction <add>, %29, %cst_26 [1] : vector<16x384xf32> to vector<16xf32>
    %31 = vector.shape_cast %30 : vector<16xf32> to vector<16x1xf32>
    %32 = arith.addf %0, %31 : vector<16x1xf32>
    %cst_27 = arith.constant 3.906250e-03 : f32
    %33 = vector.broadcast %cst_27 : f32 to vector<16x1xf32>
    %34 = arith.mulf %32, %33 : vector<16x1xf32>
    %c0_28 = arith.constant 0 : index
    %c0_29 = arith.constant 0 : index
    %35 = vector.load %arg4[%c0_28, %c0_29] : memref<16x128xf32, #tpu.memory_space<vmem>>, vector<16x128xf32>
    %36 = vector.broadcast %34 : vector<16x1xf32> to vector<16x128xf32>
    %37 = arith.mulf %36, %35 : vector<16x128xf32>
    %cst_30 = arith.constant dense<0.000000e+00> : vector<128xf32>
    %38 = vector.multi_reduction <add>, %37, %cst_30 [0] : vector<16x128xf32> to vector<128xf32>
    %39 = vector.shape_cast %38 : vector<128xf32> to vector<1x128xf32>
    %c0_31 = arith.constant 0 : index
    %c0_32 = arith.constant 0 : index
    %40 = vector.load %arg5[%c0_31, %c0_32] : memref<1x128xf32, #tpu.memory_space<vmem>>, vector<1x128xf32>
    %41 = arith.addf %39, %40 : vector<1x128xf32>
    %c0_33 = arith.constant 0 : index
    %c0_34 = arith.constant 0 : index
    %c0_35 = arith.constant 0 : index
    %42 = vector.load %arg7[%c0_33, %c0_34, %c0_35] : memref<1x1x128xf32, #tpu.memory_space<vmem>>, vector<1x1x128xf32>
    %43 = vector.shape_cast %42 : vector<1x1x128xf32> to vector<1x128xf32>
    %44 = vector.shape_cast %41 : vector<1x128xf32> to vector<1x1x128xf32>
    tpu.vector_store %arg7[%c0_33, %c0_34, %c0_35], %44 {strides = array<i32>} : memref<1x1x128xf32, #tpu.memory_space<vmem>>, vector<1x1x128xf32>,
    return
  }
  func.func @transform_0(%arg0: i32) -> (i32, i32, i32) {
    %c0_i32 = arith.constant 0 : i32
    %c0_i32_0 = arith.constant 0 : i32
    %c0_i32_1 = arith.constant 0 : i32
    return %arg0, %c0_i32, %c0_i32_0 : i32, i32, i32
  }
  func.func @transform_1(%arg0: i32) -> (i32, i32) {
    %c0_i32 = arith.constant 0 : i32
    %c0_i32_0 = arith.constant 0 : i32
    %c0_i32_1 = arith.constant 0 : i32
    return %c0_i32, %c0_i32_0 : i32, i32
  }
  func.func @transform_2(%arg0: i32) -> (i32, i32) {
    %c0_i32 = arith.constant 0 : i32
    %c0_i32_0 = arith.constant 0 : i32
    %c0_i32_1 = arith.constant 0 : i32
    return %c0_i32, %c0_i32_0 : i32, i32
  }
  func.func @transform_3(%arg0: i32) -> (i32, i32) {
    %c0_i32 = arith.constant 0 : i32
    %c0_i32_0 = arith.constant 0 : i32
    %c0_i32_1 = arith.constant 0 : i32
    return %c0_i32, %c0_i32_0 : i32, i32
  }
  func.func @transform_4(%arg0: i32) -> (i32, i32) {
    %c0_i32 = arith.constant 0 : i32
    %c0_i32_0 = arith.constant 0 : i32
    %c0_i32_1 = arith.constant 0 : i32
    return %c0_i32, %c0_i32_0 : i32, i32
  }
  func.func @transform_5(%arg0: i32) -> (i32, i32) {
    %c0_i32 = arith.constant 0 : i32
    %c0_i32_0 = arith.constant 0 : i32
    %c0_i32_1 = arith.constant 0 : i32
    return %c0_i32, %c0_i32_0 : i32, i32
  }
  func.func @transform_6(%arg0: i32) -> (i32, i32, i32) {
    %c0_i32 = arith.constant 0 : i32
    %c0_i32_0 = arith.constant 0 : i32
    %c0_i32_1 = arith.constant 0 : i32
    return %arg0, %c0_i32, %c0_i32_0 : i32, i32, i32
  }
}

</mosaic_0001>

<llo_original>
// kernel: augparam_forward.1
$region0: #{augparam_forward.1}
  #allocation0 [shape = 'u32[]', space=smem, size = 0x4, offset = 0x4, fixed_abs, tag = 'smem constant byte address 0x4 - core index']
  #allocation1 [shape = 'u32[144,128]{1,0:T(1,128)}', space=vmem, size = 0x12000, scoped, tag = 'internal scratch']
  %s0 = inlined_call_operand.vmem [shape: f32[2,3,512], index: 0, kind: input, shape index: {}]
  %s1 = inlined_call_operand.vmem [shape: f32[16,27], index: 1, kind: input, shape index: {}]
  %s2 = inlined_call_operand.vmem [shape: f32[16,1], index: 2, kind: input, shape index: {}]
  %s3 = inlined_call_operand.vmem [shape: f32[16,128], index: 3, kind: input, shape index: {}]
  %s4 = inlined_call_operand.vmem [shape: f32[1,128], index: 4, kind: input, shape index: {}]
  %s5 = inlined_call_operand.vmem [shape: f32[1,384], index: 5, kind: input, shape index: {}]
  %s6 = inlined_call_operand.hbm [shape: f32[2,1,128], index: 6, kind: output, shape index: {}]
  %s7 = sld [smem:[#allocation0]]
  $region57: #{augparam_forward.1} parent=0
    _
  %s9 = ssub.s32 1, %s7
  %s10 = scalar_select 0, %s9, %s7
  $region1: #{augparam_forward.1} parent=0
    #allocation2 [shape = 'u8[1024]{0}', space=vmem, size = 0x400, scoped, tag = 'output window, operand 0']
    #allocation3 [shape = 's32[2]{0}', space=sflag, size = 0x8, scoped, tag = 'scoped memory for augparam_forward.1']
    %11 = vsyncpa [#allocation3], 0
    %s12 = scalar_lea.sflag [#allocation3], 1
    %13 = vsyncpa %s12, 0
    loop: start=0, step=1, limit=4
    $region2: #{augparam_forward.1} parent=1 // loop_pre_header
      _
    $region3: #{augparam_forward.1} parent=1 // loop_header
      %s15 = sphi 0, %s19
      %p16 = scmp.ge.s32.totalorder %s15, 4
      %s25 = sphi 0, %s27
      %s28 = sphi 0, %s25
      %s29 = sphi 0, %s28
      %s45 = sphi 0, %s29
      %s49 = sphi 0, %s49
      %s51 = sphi 0, %s49
      %s52 = sphi 0, %s51
      %s66 = sphi 0, %s52
      %s70 = sphi 0, %s70
      %s72 = sphi 0, %s70
      %s73 = sphi 0, %s72
      %s87 = sphi 0, %s73
      %s91 = sphi 0, %s91
      %s93 = sphi 0, %s91
      %s94 = sphi 0, %s93
      %s108 = sphi 0, %s94
      %s112 = sphi 0, %s112
      %s114 = sphi 0, %s112
      %s115 = sphi 0, %s114
      %s129 = sphi 0, %s115
      %s133 = sphi 0, %s133
      %s135 = sphi 0, %s133
      %s136 = sphi 0, %s135
      %s150 = sphi 0, %s136
      %s156 = sphi 0, %s158
      %s159 = sphi 0, %s156
      %s160 = sphi 0, %s159
      %s176 = sphi 0, %s160
    $region4: #{augparam_forward.1} parent=1 // loop_header_branch
      %18 = sbr.rel (%p16) target = $region8
    $region5: #{augparam_forward.1} parent=1 // loop_body
      %s20 = ssub.s32 %s15, 1
      %s21 = ssub.s32 %s15, 2
      %s22 = sadd.s32 %s15, 1
      %s23 = ssub.s32 %s15, %s22
      %p24 = scmp.eq.s32.totalorder %s23, 0
      %s26 = sadd.s32 %s25, 1
      %s27 = scalar_select %p24, %s25, %s26
      %p30 = pneg %p24
      %p31 = scmp.eq.s32.totalorder %s15, 1
      %p32 = por %p30, %p31
      %p33 = scmp.ne.s32.totalorder %s25, %s28
      %p34 = scmp.eq.s32.totalorder %s15, 0
      %p35 = por %p33, %p34
      %p36 = scmp.ne.s32.totalorder %s25, %s28
      %p37 = scmp.eq.s32.totalorder %s20, 1
      %p38 = por %p36, %p37
      %p39 = scmp.ne.s32.totalorder %s28, %s29
      %p40 = scmp.eq.s32.totalorder %s20, 0
      %p41 = por %p39, %p40
      %p42 = scmp.ne.s32.totalorder %s28, %s29
      %p43 = scmp.eq.s32.totalorder %s21, 1
      %p44 = por %p42, %p43
      %p46 = scmp.ne.s32.totalorder %s29, %s45
      %p47 = scmp.eq.s32.totalorder %s21, 0
      %p48 = por %p46, %p47
      %s50 = sadd.s32 %s49, 1
      %p53 = scmp.eq.s32.totalorder %s15, 1
      %p54 = scmp.ne.s32.totalorder %s49, %s51
      %p55 = scmp.eq.s32.totalorder %s15, 0
      %p56 = por %p54, %p55
      %p57 = scmp.ne.s32.totalorder %s49, %s51
      %p58 = scmp.eq.s32.totalorder %s20, 1
      %p59 = por %p57, %p58
      %p60 = scmp.ne.s32.totalorder %s51, %s52
      %p61 = scmp.eq.s32.totalorder %s20, 0
      %p62 = por %p60, %p61
      %p63 = scmp.ne.s32.totalorder %s51, %s52
      %p64 = scmp.eq.s32.totalorder %s21, 1
      %p65 = por %p63, %p64
      %p67 = scmp.ne.s32.totalorder %s52, %s66
      %p68 = scmp.eq.s32.totalorder %s21, 0
      %p69 = por %p67, %p68
      %s71 = sadd.s32 %s70, 1
      %p74 = scmp.eq.s32.totalorder %s15, 1
      %p75 = scmp.ne.s32.totalorder %s70, %s72
      %p76 = scmp.eq.s32.totalorder %s15, 0
      %p77 = por %p75, %p76
      %p78 = scmp.ne.s32.totalorder %s70, %s72
      %p79 = scmp.eq.s32.totalorder %s20, 1
      %p80 = por %p78, %p79
      %p81 = scmp.ne.s32.totalorder %s72, %s73
      %p82 = scmp.eq.s32.totalorder %s20, 0
      %p83 = por %p81, %p82
      %p84 = scmp.ne.s32.totalorder %s72, %s73
      %p85 = scmp.eq.s32.totalorder %s21, 1
      %p86 = por %p84, %p85
      %p88 = scmp.ne.s32.totalorder %s73, %s87
      %p89 = scmp.eq.s32.totalorder %s21, 0
      %p90 = por %p88, %p89
      %s92 = sadd.s32 %s91, 1
      %p95 = scmp.eq.s32.totalorder %s15, 1
      %p96 = scmp.ne.s32.totalorder %s91, %s93
      %p97 = scmp.eq.s32.totalorder %s15, 0
      %p98 = por %p96, %p97
      %p99 = scmp.ne.s32.totalorder %s91, %s93
      %p100 = scmp.eq.s32.totalorder %s20, 1
      %p101 = por %p99, %p100
      %p102 = scmp.ne.s32.totalorder %s93, %s94
      %p103 = scmp.eq.s32.totalorder %s20, 0
      %p104 = por %p102, %p103
      %p105 = scmp.ne.s32.totalorder %s93, %s94
      %p106 = scmp.eq.s32.totalorder %s21, 1
      %p107 = por %p105, %p106
      %p109 = scmp.ne.s32.totalorder %s94, %s108
      %p110 = scmp.eq.s32.totalorder %s21, 0
      %p111 = por %p109, %p110
      %s113 = sadd.s32 %s112, 1
      %p116 = scmp.eq.s32.totalorder %s15, 1
      %p117 = scmp.ne.s32.totalorder %s112, %s114
      %p118 = scmp.eq.s32.totalorder %s15, 0
      %p119 = por %p117, %p118
      %p120 = scmp.ne.s32.totalorder %s112, %s114
      %p121 = scmp.eq.s32.totalorder %s20, 1
      %p122 = por %p120, %p121
      %p123 = scmp.ne.s32.totalorder %s114, %s115
      %p124 = scmp.eq.s32.totalorder %s20, 0
      %p125 = por %p123, %p124
      %p126 = scmp.ne.s32.totalorder %s114, %s115
      %p127 = scmp.eq.s32.totalorder %s21, 1
      %p128 = por %p126, %p127
      %p130 = scmp.ne.s32.totalorder %s115, %s129
      %p131 = scmp.eq.s32.totalorder %s21, 0
      %p132 = por %p130, %p131
      %s134 = sadd.s32 %s133, 1
      %p137 = scmp.eq.s32.totalorder %s15, 1
      %p138 = scmp.ne.s32.totalorder %s133, %s135
      %p139 = scmp.eq.s32.totalorder %s15, 0
      %p140 = por %p138, %p139
      %p141 = scmp.ne.s32.totalorder %s133, %s135
      %p142 = scmp.eq.s32.totalorder %s20, 1
      %p143 = por %p141, %p142
      %p144 = scmp.ne.s32.totalorder %s135, %s136
      %p145 = scmp.eq.s32.totalorder %s20, 0
      %p146 = por %p144, %p145
      %p147 = scmp.ne.s32.totalorder %s135, %s136
      %p148 = scmp.eq.s32.totalorder %s21, 1
      %p149 = por %p147, %p148
      %p151 = scmp.ne.s32.totalorder %s136, %s150
      %p152 = scmp.eq.s32.totalorder %s21, 0
      %p153 = por %p151, %p152
      %s154 = ssub.s32 %s15, %s22
      %p155 = scmp.eq.s32.totalorder %s154, 0
      %s157 = sadd.s32 %s156, 1
      %s158 = scalar_select %p155, %s156, %s157
      %p161 = pneg %p155
      %p162 = scmp.eq.s32.totalorder %s15, 1
      %p163 = por %p161, %p162
      %p164 = scmp.ne.s32.totalorder %s156, %s159
      %p165 = scmp.eq.s32.totalorder %s15, 0
      %p166 = por %p164, %p165
      %p167 = scmp.ne.s32.totalorder %s156, %s159
      %p168 = scmp.eq.s32.totalorder %s20, 1
      %p169 = por %p167, %p168
      %p170 = scmp.ne.s32.totalorder %s159, %s160
      %p171 = scmp.eq.s32.totalorder %s20, 0
      %p172 = por %p170, %p171
      %p173 = scmp.ne.s32.totalorder %s159, %s160
      %p174 = scmp.eq.s32.totalorder %s21, 1
      %p175 = por %p173, %p174
      %p177 = scmp.ne.s32.totalorder %s160, %s176
      %p178 = scmp.eq.s32.totalorder %s21, 0
      %p179 = por %p177, %p178
      %p180 = scmp.le.s32.totalorder 1, %s15
      %p181 = scmp.lt.s32.totalorder %s15, 3
      %p182 = pnand %p180, %p181
      %p183 = pneg %p182
      // Predicated region
      $region9: #{augparam_forward.1} parent=5 // pred_check
        _
      $region10: #{augparam_forward.1} parent=5 // pred_check_branch
        %185 = sbr.rel (%p182) target = $region12
      $region11: #{augparam_forward.1} parent=5 // pred_region
        %s186 = ssub.s32 %s15, 1
        // Predicated region
        $region13: #{augparam_forward.1} parent=11 // pred_check
          %p187 = pneg %p62
        $region14: #{augparam_forward.1} parent=11 // pred_check_branch
          %189 = sbr.rel (%p187) target = $region16
        $region15: #{augparam_forward.1} parent=11 // pred_region
          _
        $region16: #{augparam_forward.1} parent=11 // pred_fallthru
          _
        // Predicated region
        $region17: #{augparam_forward.1} parent=11 // pred_check
          %p190 = pneg %p83
        $region18: #{augparam_forward.1} parent=11 // pred_check_branch
          %192 = sbr.rel (%p190) target = $region20
        $region19: #{augparam_forward.1} parent=11 // pred_region
          _
        $region20: #{augparam_forward.1} parent=11 // pred_fallthru
          _
        // Predicated region
        $region21: #{augparam_forward.1} parent=11 // pred_check
          %p193 = pneg %p104
        $region22: #{augparam_forward.1} parent=11 // pred_check_branch
          %195 = sbr.rel (%p193) target = $region24
        $region23: #{augparam_forward.1} parent=11 // pred_region
          _
        $region24: #{augparam_forward.1} parent=11 // pred_fallthru
          _
        // Predicated region
        $region25: #{augparam_forward.1} parent=11 // pred_check
          %p196 = pneg %p125
        $region26: #{augparam_forward.1} parent=11 // pred_check_branch
          %198 = sbr.rel (%p196) target = $region28
        $region27: #{augparam_forward.1} parent=11 // pred_region
          _
        $region28: #{augparam_forward.1} parent=11 // pred_fallthru
          _
        // Predicated region
        $region29: #{augparam_forward.1} parent=11 // pred_check
          %p199 = pneg %p146
        $region30: #{augparam_forward.1} parent=11 // pred_check_branch
          %201 = sbr.rel (%p199) target = $region32
        $region31: #{augparam_forward.1} parent=11 // pred_region
          _
        $region32: #{augparam_forward.1} parent=11 // pred_fallthru
          _
      $region12: #{augparam_forward.1} parent=5 // pred_fallthru
        _
      %p202 = scmp.lt.s32.totalorder %s15, 2
      // Predicated region
      $region33: #{augparam_forward.1} parent=5 // pred_check
        %p203 = pneg %p202
      $region34: #{augparam_forward.1} parent=5 // pred_check_branch
        %205 = sbr.rel (%p203) target = $region36
      $region35: #{augparam_forward.1} parent=5 // pred_region
        // Predicated region
        $region37: #{augparam_forward.1} parent=35 // pred_check
          %p206 = pneg %p35
        $region38: #{augparam_forward.1} parent=35 // pred_check_branch
          %208 = sbr.rel (%p206) target = $region40
        $region39: #{augparam_forward.1} parent=35 // pred_region
          %p209 = scmp.lt.s32.totalorder %s15, 1
          %s210 = scalar_select %p209, %s15, 1
          %s211 = smul.addr %s210, 4
          %s212 = smul.addr %s211, 4
          %s213 = scalar_lea.vmem %s0, %s212
        $region40: #{augparam_forward.1} parent=35 // pred_fallthru
          _
      $region36: #{augparam_forward.1} parent=5 // pred_fallthru
        _
      %p214 = scmp.le.s32.totalorder 1, %s15
      %p215 = scmp.lt.s32.totalorder %s15, 3
      %p216 = pnand %p214, %p215
      %p217 = pneg %p216
      // Predicated region
      $region41: #{augparam_forward.1} parent=5 // pred_check
        _
      $region42: #{augparam_forward.1} parent=5 // pred_check_branch
        %219 = sbr.rel (%p216) target = $region44
      $region43: #{augparam_forward.1} parent=5 // pred_region
        %s220 = ssub.s32 %s15, 1
        %p221 = scmp.lt.s32.totalorder %s20, 1
        %s222 = scalar_select %p221, %s20, 1
        %s223 = smul.addr %s222, 4
        %s224 = smul.addr %s223, 4
        %s225 = scalar_lea.vmem %s0, %s224
        %p226 = pneg %p41
        %p227 = pneg %p38
        %p228 = pneg %p62
        %p229 = pneg %p59
        %p230 = pneg %p83
        %p231 = pneg %p80
        %p232 = pneg %p104
        %p233 = pneg %p101
        %p234 = pneg %p125
        %p235 = pneg %p122
        %p236 = pneg %p146
        %p237 = pneg %p143
        %p238 = pneg %p172
        %p239 = pneg %p169
        %s240 = sand.u32 %s159, 1
        %s241 = scalar_lea.sflag [#allocation3], %s240
        %s242 = sand.u32 %s159, 1
        %s243 = scalar_lea.vmem [#allocation2], %s242
        %p244 = scmp.lt.s32.totalorder %s20, 1
        %s245 = scalar_select %p244, %s20, 1
        %s246 = smul.addr %s245, 4
        %s247 = smul.addr %s246, 4
        %s248 = scalar_lea.vmem %s0, %s247
        %v249 = vld [vmem:[%s248] sm:$0x77]
        %v250 = vld [vmem:[%s248 + $0x8] sm:$0x7]
        %v251 = vld [vmem:[%s248 + $0x8] sm:$0x77]
        %v253 = vcombine.high %v249, %v249
        %v256 = vcombine.high %v251, %v251
        %v257 = vrot.slane %v249, 5
        %v258 = vrot.slane %v253, 5
        %v259 = vrot.slane %v251, 5
        %v260 = vrot.slane %v256, 5
        %261 = vrot.lane.b32.xlu0 %v257, 127
        %v262 = vpop.permute.xlu0 %261
        %263 = vrot.lane.b32.xlu0 %v258, 127
        %v264 = vpop.permute.xlu0 %263
        %265 = vrot.lane.b32.xlu0 %v259, 127
        %v266 = vpop.permute.xlu0 %265
        %267 = vrot.lane.b32.xlu0 %v260, 127
        %v268 = vpop.permute.xlu0 %267
        %vm269 = vcmask 1039360
        %v270 = vsel %vm269, %v262, %v264
        %v271 = vsel %vm269, %v264, %v266
        %v272 = vsel %vm269, %v266, %v268
        %v276 = vrot.slane %v249, 2
        %v277 = vrot.slane %v253, 2
        %v278 = vrot.slane %v251, 2
        %v279 = vrot.slane %v256, 2
        %280 = vrot.lane.b32.xlu0 %v276, 126
        %v281 = vpop.permute.xlu0 %280
        %282 = vrot.lane.b32.xlu0 %v277, 126
        %v283 = vpop.permute.xlu0 %282
        %284 = vrot.lane.b32.xlu0 %v278, 126
        %v285 = vpop.permute.xlu0 %284
        %286 = vrot.lane.b32.xlu0 %v279, 126
        %v287 = vpop.permute.xlu0 %286
        %vm288 = vcmask 1031168
        %v289 = vsel %vm288, %v281, %v283
        %v290 = vsel %vm288, %v283, %v285
        %v291 = vsel %vm288, %v285, %v287
        %v295 = vrot.slane %v249, 7
        %v296 = vrot.slane %v253, 7
        %v297 = vrot.slane %v251, 7
        %v298 = vrot.slane %v256, 7
        %299 = vrot.lane.b32.xlu0 %v295, 110
        %v300 = vpop.permute.xlu0 %299
        %301 = vrot.lane.b32.xlu0 %v296, 110
        %v302 = vpop.permute.xlu0 %301
        %303 = vrot.lane.b32.xlu0 %v297, 110
        %v304 = vpop.permute.xlu0 %303
        %305 = vrot.lane.b32.xlu0 %v298, 110
        %v306 = vpop.permute.xlu0 %305
        %vm307 = vcmask 900096
        %v308 = vsel %vm307, %v300, %v302
        %v309 = vsel %vm307, %v302, %v304
        %v310 = vsel %vm307, %v304, %v306
        %v314 = vcombine.low %v249, %v249
        %v315 = vcombine.low %v251, %v251
        %316 = vrot.lane.b32.xlu0 %v314, 109
        %v317 = vpop.permute.xlu0 %316
        %318 = vrot.lane.b32.xlu0 %v249, 109
        %v319 = vpop.permute.xlu0 %318
        %320 = vrot.lane.b32.xlu0 %v315, 109
        %v321 = vpop.permute.xlu0 %320
        %322 = vrot.lane.b32.xlu0 %v251, 109
        %v323 = vpop.permute.xlu0 %322
        %vm324 = vcmask 891904
        %v325 = vsel %vm324, %v317, %v319
        %v326 = vsel %vm324, %v319, %v321
        %v327 = vsel %vm324, %v321, %v323
        %v331 = vrot.slane %v249, 1
        %v332 = vrot.slane %v253, 1
        %v333 = vrot.slane %v251, 1
        %v334 = vrot.slane %v256, 1
        %335 = vrot.lane.b32.xlu0 %v331, 108
        %v336 = vpop.permute.xlu0 %335
        %337 = vrot.lane.b32.xlu0 %v332, 108
        %v338 = vpop.permute.xlu0 %337
        %339 = vrot.lane.b32.xlu0 %v333, 108
        %v340 = vpop.permute.xlu0 %339
        %341 = vrot.lane.b32.xlu0 %v334, 108
        %v342 = vpop.permute.xlu0 %341
        %vm343 = vcmask 883712
        %v344 = vsel %vm343, %v336, %v338
        %v345 = vsel %vm343, %v338, %v340
        %v346 = vsel %vm343, %v340, %v342
        %v350 = vrot.slane %v249, 6
        %v351 = vrot.slane %v253, 6
        %v352 = vrot.slane %v251, 6
        %v353 = vrot.slane %v256, 6
        %354 = vrot.lane.b32.xlu0 %v350, 92
        %v355 = vpop.permute.xlu0 %354
        %356 = vrot.lane.b32.xlu0 %v351, 92
        %v357 = vpop.permute.xlu0 %356
        %358 = vrot.lane.b32.xlu0 %v352, 92
        %v359 = vpop.permute.xlu0 %358
        %360 = vrot.lane.b32.xlu0 %v353, 92
        %v361 = vpop.permute.xlu0 %360
        %vm362 = vcmask 752640
        %v363 = vsel %vm362, %v355, %v357
        %v364 = vsel %vm362, %v357, %v359
        %v365 = vsel %vm362, %v359, %v361
        %v369 = vrot.slane %v249, 3
        %v370 = vrot.slane %v253, 3
        %v371 = vrot.slane %v251, 3
        %v372 = vrot.slane %v256, 3
        %373 = vrot.lane.b32.xlu0 %v369, 91
        %v374 = vpop.permute.xlu0 %373
        %375 = vrot.lane.b32.xlu0 %v370, 91
        %v376 = vpop.permute.xlu0 %375
        %377 = vrot.lane.b32.xlu0 %v371, 91
        %v378 = vpop.permute.xlu0 %377
        %379 = vrot.lane.b32.xlu0 %v372, 91
        %v380 = vpop.permute.xlu0 %379
        %vm381 = vcmask 744448
        %v382 = vsel %vm381, %v374, %v376
        %v383 = vsel %vm381, %v376, %v378
        %v384 = vsel %vm381, %v378, %v380
        %388 = vrot.lane.b32.xlu0 %v249, 90
        %v389 = vpop.permute.xlu0 %388
        %390 = vrot.lane.b32.xlu0 %v253, 90
        %v391 = vpop.permute.xlu0 %390
        %392 = vrot.lane.b32.xlu0 %v251, 90
        %v393 = vpop.permute.xlu0 %392
        %394 = vrot.lane.b32.xlu0 %v256, 90
        %v395 = vpop.permute.xlu0 %394
        %vm396 = vcmask 736256
        %v397 = vsel %vm396, %v389, %v391
        %v398 = vsel %vm396, %v391, %v393
        %v399 = vsel %vm396, %v393, %v395
        %vm400 = vcmask 1042432
        %v401 = vsel %vm400, %v249, %v270
        %v402 = vsel %vm400, %v253, %v271
        %v403 = vsel %vm400, %v250, %v272
        %vm404 = vcmask 1045504
        %v405 = vsel %vm404, %v401, %v289
        %v406 = vsel %vm404, %v402, %v290
        %v407 = vsel %vm404, %v403, %v291
        %vm408 = vcmask 1040384
        %v409 = vsel %vm408, %v289, %v308
        %v410 = vsel %vm408, %v290, %v309
        %v411 = vsel %vm408, %v291, %v310
        %vm412 = vcmask 1043456
        %v413 = vsel %vm412, %v409, %v325
        %v414 = vsel %vm412, %v410, %v326
        %v415 = vsel %vm412, %v411, %v327
        %vm416 = vcmask 1046528
        %v417 = vsel %vm416, %v413, %v344
        %v418 = vsel %vm416, %v414, %v345
        %v419 = vsel %vm416, %v415, %v346
        %vm420 = vcmask 1041408
        %v421 = vsel %vm420, %v344, %v363
        %v422 = vsel %vm420, %v345, %v364
        %v423 = vsel %vm420, %v346, %v365
        %vm424 = vcmask 1044480
        %v425 = vsel %vm424, %v421, %v382
        %v426 = vsel %vm424, %v422, %v383
        %v427 = vsel %vm424, %v423, %v384
        %v428 = vld [vmem:[%s1] sm:$0xff]
        %v429 = vld [vmem:[%s1 + $0x8] sm:$0xff]
        %v430 = vld [vmem:[%s2] sm:$0xff]
        %v431 = vld [vmem:[%s2 + $0x8] sm:$0xff]
        %433 = vset.pattern.permute.xlu0 0
        %434 = vperm.xlu0 %433, %v430
        %v435 = vpop.permute.xlu0 %434
        %438 = vset.pattern.permute.xlu0 0
        %439 = vperm.xlu0 %438, %v431
        %v440 = vpop.permute.xlu0 %439
        %vm442 = vcmask 220160
        %v444 = vsel %vm442, %v428, 0
        %v447 = vsel %vm442, %v429, 0
        %v449 = vsel %vm400, %v397, 0
        %v451 = vsel %vm400, %v398, 0
        %v453 = vsel %vm400, %v399, 0
        %455 = vmatprep.subr.mxu0 %v406
        %456 = vmatpush1.msra.mxu0 %v405
        %457 = vmatprep.subr.mxu0 %v418
        %458 = vmatpush1.msra.mxu0 %v417
        %459 = vmatprep.subr.mxu0 %v426
        %460 = vmatpush1.msra.mxu0 %v425
        %461 = vmatprep.subr.mxu0 %v451
        %462 = vmatpush1.msra.mxu0 %v449
        %463 = vmatprep.subr.mxu0 0.0
        %464 = vmatpush1.msra.mxu0 0.0
        %465 = vmatprep.subr.mxu0 0.0
        %466 = vmatpush1.msra.mxu0 0.0
        %467 = vmatprep.subr.mxu0 0.0
        %468 = vmatpush1.msra.mxu0 0.0
        %469 = vmatprep.subr.mxu0 0.0
        %470 = vmatpush1.msra.mxu0 0.0
        %471 = vmatprep.subr.mxu0 0.0
        %472 = vmatpush1.msra.mxu0 0.0
        %473 = vmatprep.subr.mxu0 0.0
        %474 = vmatpush1.msra.mxu0 0.0
        %475 = vmatprep.subr.mxu0 0.0
        %476 = vmatpush1.msra.mxu0 0.0
        %477 = vmatprep.subr.mxu0 0.0
        %478 = vmatpush1.msra.mxu0 0.0
        %479 = vmatprep.subr.mxu0 0.0
        %480 = vmatpush1.msra.mxu0 0.0
        %481 = vmatprep.subr.mxu0 0.0
        %482 = vmatpush1.msra.mxu0 0.0
        %483 = vmatprep.subr.mxu0 0.0
        %484 = vmatpush1.msra.mxu0 0.0
        %485 = vmatprep.subr.mxu0 0.0
        %486 = vmatpush1.msra.mxu0 0.0
        %487 = vmatprep.subr.mxu0 0.0
        %488 = vmatpush1.msra.mxu0 0.0
        %489 = vmatprep.subr.mxu0 0.0
        %490 = vmatpush1.msra.mxu0 0.0
        %491 = vmatprep.subr.mxu0 0.0
        %492 = vmatpush1.msra.mxu0 0.0
        %493 = vmatprep.subr.mxu0 0.0
        %494 = vmatpush1.msra.mxu0 0.0
        %495 = vmatprep.subr.mxu0 0.0
        %496 = vmatpush1.msra.mxu0 0.0
        %497 = vmatprep.subr.mxu0 0.0
        %498 = vmatpush1.msra.mxu0 0.0
        %499 = vmatprep.subr.mxu0 0.0
        %500 = vmatpush1.msra.mxu0 0.0
        %501 = vmatprep.subr.mxu0 0.0
        %502 = vmatpush1.msra.mxu0 0.0
        %503 = vmatprep.subr.mxu0 0.0
        %504 = vmatpush1.msra.mxu0 0.0
        %505 = vmatprep.subr.mxu0 0.0
        %506 = vmatpush1.msra.mxu0 0.0
        %507 = vmatprep.subr.mxu0 0.0
        %508 = vmatpush1.msra.mxu0 0.0
        %509 = vmatprep.subr.mxu0 0.0
        %510 = vmatpush1.msra.mxu0 0.0
        %511 = vmatprep.subr.mxu0 0.0
        %512 = vmatpush1.msra.mxu0 0.0
        %513 = vmatprep.subr.mxu0 0.0
        %514 = vmatpush1.msra.mxu0 0.0
        %515 = vmatprep.subr.mxu0 0.0
        %516 = vmatpush1.msra.mxu0 0.0
        %517 = vmatprep.subr.mxu0 0.0
        %518 = vmatpush1.msra.mxu0 0.0
        %519 = vmatprep.mubr.f32.mxu0 0.0
        %520 = vmatmul.mubr.f32.gmra.mrb[0].mxu0 %v444
        %v521 = vpop.f32.mrb[0].mxu0
        %v522 = vadd.f32 %v435, %v521
        %v523 = vpop.f32.mrb[0].mxu0
        %v524 = vadd.f32 %v435, %v523
        %525 = vmatprep.mubr.f32.mxu0 0.0
        %526 = vmatmul.mubr.f32.gmra.mrb[0].mxu0 %v447
        %v527 = vpop.f32.mrb[0].mxu0
        %v528 = vadd.f32 %v440, %v527
        %v529 = vpop.f32.mrb[0].mxu0
        %v530 = vadd.f32 %v440, %v529
        %531 = vdwg.mxu0
        %532 = vmatprep.subr.mxu0 0.0
        %533 = vmatpush1.msra.mxu0 %v407
        %534 = vmatprep.subr.mxu0 0.0
        %535 = vmatpush1.msra.mxu0 %v419
        %536 = vmatprep.subr.mxu0 0.0
        %537 = vmatpush1.msra.mxu0 %v427
        %538 = vmatprep.subr.mxu0 0.0
        %539 = vmatpush1.msra.mxu0 %v453
        %540 = vmatprep.subr.mxu0 0.0
        %541 = vmatpush1.msra.mxu0 0.0
        %542 = vmatprep.subr.mxu0 0.0
        %543 = vmatpush1.msra.mxu0 0.0
        %544 = vmatprep.subr.mxu0 0.0
        %545 = vmatpush1.msra.mxu0 0.0
        %546 = vmatprep.subr.mxu0 0.0
        %547 = vmatpush1.msra.mxu0 0.0
        %548 = vmatprep.subr.mxu0 0.0
        %549 = vmatpush1.msra.mxu0 0.0
        %550 = vmatprep.subr.mxu0 0.0
        %551 = vmatpush1.msra.mxu0 0.0
        %552 = vmatprep.subr.mxu0 0.0
        %553 = vmatpush1.msra.mxu0 0.0
        %554 = vmatprep.subr.mxu0 0.0
        %555 = vmatpush1.msra.mxu0 0.0
        %556 = vmatprep.subr.mxu0 0.0
        %557 = vmatpush1.msra.mxu0 0.0
        %558 = vmatprep.subr.mxu0 0.0
        %559 = vmatpush1.msra.mxu0 0.0
        %560 = vmatprep.subr.mxu0 0.0
        %561 = vmatpush1.msra.mxu0 0.0
        %562 = vmatprep.subr.mxu0 0.0
        %563 = vmatpush1.msra.mxu0 0.0
        %564 = vmatprep.subr.mxu0 0.0
        %565 = vmatpush1.msra.mxu0 0.0
        %566 = vmatprep.subr.mxu0 0.0
        %567 = vmatpush1.msra.mxu0 0.0
        %568 = vmatprep.subr.mxu0 0.0
        %569 = vmatpush1.msra.mxu0 0.0
        %570 = vmatprep.subr.mxu0 0.0
        %571 = vmatpush1.msra.mxu0 0.0
        %572 = vmatprep.subr.mxu0 0.0
        %573 = vmatpush1.msra.mxu0 0.0
        %574 = vmatprep.subr.mxu0 0.0
        %575 = vmatpush1.msra.mxu0 0.0
        %576 = vmatprep.subr.mxu0 0.0
        %577 = vmatpush1.msra.mxu0 0.0
        %578 = vmatprep.subr.mxu0 0.0
        %579 = vmatpush1.msra.mxu0 0.0
        %580 = vmatprep.subr.mxu0 0.0
        %581 = vmatpush1.msra.mxu0 0.0
        %582 = vmatprep.subr.mxu0 0.0
        %583 = vmatpush1.msra.mxu0 0.0
        %584 = vmatprep.subr.mxu0 0.0
        %585 = vmatpush1.msra.mxu0 0.0
        %586 = vmatprep.subr.mxu0 0.0
        %587 = vmatpush1.msra.mxu0 0.0
        %588 = vmatprep.subr.mxu0 0.0
        %589 = vmatpush1.msra.mxu0 0.0
        %590 = vmatprep.subr.mxu0 0.0
        %591 = vmatpush1.msra.mxu0 0.0
        %592 = vmatprep.subr.mxu0 0.0
        %593 = vmatpush1.msra.mxu0 0.0
        %594 = vmatprep.subr.mxu0 0.0
        %595 = vmatpush1.msra.mxu0 0.0
        %596 = vmatprep.mubr.f32.mxu0 0.0
        %597 = vmatmul.mubr.f32.gmra.mrb[0].mxu0 %v444
        %v598 = vpop.f32.mrb[0].mxu0
        %v599 = vadd.f32 %v435, %v598
        %v600 = vpop.f32.mrb[0].mxu0
        %601 = vmatprep.mubr.f32.mxu0 0.0
        %602 = vmatmul.mubr.f32.gmra.mrb[0].mxu0 %v447
        %v603 = vpop.f32.mrb[0].mxu0
        %v604 = vadd.f32 %v440, %v603
        %v605 = vpop.f32.mrb[0].mxu0
        %606 = vdwg.mxu0
        %v607 = vmax.f32 %v522, 0.0
        %v608 = vmax.f32 %v524, 0.0
        %v609 = vmax.f32 %v599, 0.0
        %v610 = vmax.f32 %v528, 0.0
        %v611 = vmax.f32 %v530, 0.0
        %v612 = vmax.f32 %v604, 0.0
        %v613 = vld [vmem:[%s5] sm:$0x7]
        %v615 = vlaneseq
        %v616 = vshrl.u32 %v615, 7
        %v617 = vsub.s32 0, %v616
        %v618 = vrot.slane %v613, %v617
        %v619 = vlaneseq
        %v620 = vshrl.u32 %v619, 7
        %v621 = vsub.s32 1, %v620
        %v622 = vrot.slane %v613, %v621
        %v623 = vlaneseq
        %v624 = vshrl.u32 %v623, 7
        %v625 = vsub.s32 2, %v624
        %v626 = vrot.slane %v613, %v625
        %v630 = vmul.f32 %v607, %v618
        %v631 = vmul.f32 %v608, %v622
        %v632 = vmul.f32 %v609, %v626
        %v633 = vmul.f32 %v610, %v618
        %v634 = vmul.f32 %v611, %v622
        %v635 = vmul.f32 %v612, %v626
        %v636 = vadd.f32 %v630, %v631
        %v637 = vadd.f32 %v636, %v632
        %638 = vadd.xlane.f32.xlu0 %v637
        %v639 = vpop.xlane.xlu0 %638
        %v640 = vadd.f32 %v633, %v634
        %v641 = vadd.f32 %v640, %v635
        %642 = vadd.xlane.f32.xlu0 %v641
        %v643 = vpop.xlane.xlu0 %642
        %v644 = vadd.f32 %v639, 0.0
        %v645 = vadd.f32 %v643, 0.0
        %v646 = vmul.f32 %v644, 0.00390625
        %v647 = vmul.f32 %v645, 0.00390625
        %v648 = vld [vmem:[%s3] sm:$0xff]
        %v649 = vld [vmem:[%s3 + $0x8] sm:$0xff]
        %v650 = vmul.f32 %v646, %v648
        %v651 = vmul.f32 %v647, %v649
        %v652 = vadd.f32 %v650, %v651
        %v653 = vrot.slane %v652, 4
        %v654 = vadd.f32 %v652, %v653
        %v655 = vrot.slane %v654, 2
        %v656 = vadd.f32 %v654, %v655
        %v657 = vrot.slane %v656, 1
        %v658 = vadd.f32 %v656, %v657
        %v659 = vld [vmem:[%s4] sm:$0x1]
        %v660 = vadd.f32 %v658, %v659
        %661 = vst [vmem:[%s243] sm:$0x1] %v660
        %s662 = sand.u32 %s159, 1
        %s663 = scalar_lea.sflag [#allocation3], %s662
        %s664 = sand.u32 %s159, 1
        %s665 = scalar_lea.vmem [#allocation2], %s664
        // Predicated region
        $region45: #{augparam_forward.1} parent=43 // pred_check
          %p666 = pneg %p169
        $region46: #{augparam_forward.1} parent=43 // pred_check_branch
          %668 = sbr.rel (%p666) target = $region48
        $region47: #{augparam_forward.1} parent=43 // pred_region
          %s670 = ssub.s32 16, 16
          %671 = vsyncadd %s663, %s670
          %s672 = smul.addr %s20, 16
          %s673 = scalar_lea.hbm %s6, %s672
          %s675 = sshll.u32 %s665, 4
          %s676 = int_to_ptr.vmem [resolvable:$true] %s675
          %678 = dma.vmem_to_hbm [thread:$0]  %s676, 16, %s673, %s663
        $region48: #{augparam_forward.1} parent=43 // pred_fallthru
          _
      $region44: #{augparam_forward.1} parent=5 // pred_fallthru
        _
      %p679 = scmp.le.s32.totalorder 2, %s15
      // Predicated region
      $region49: #{augparam_forward.1} parent=5 // pred_check
        %p680 = pneg %p679
      $region50: #{augparam_forward.1} parent=5 // pred_check_branch
        %682 = sbr.rel (%p680) target = $region52
      $region51: #{augparam_forward.1} parent=5 // pred_region
        %s683 = ssub.s32 %s15, 2
        // Predicated region
        $region53: #{augparam_forward.1} parent=51 // pred_check
          %p684 = pneg %p175
        $region54: #{augparam_forward.1} parent=51 // pred_check_branch
          %686 = sbr.rel (%p684) target = $region56
        $region55: #{augparam_forward.1} parent=51 // pred_region
          %s687 = sand.u32 %s160, 1
          %s688 = scalar_lea.sflag [#allocation3], %s687
          %s689 = sand.u32 %s160, 1
          %s690 = scalar_lea.vmem [#allocation2], %s689
          %691 = dma.done %s688, 16
        $region56: #{augparam_forward.1} parent=51 // pred_fallthru
          _
      $region52: #{augparam_forward.1} parent=5 // pred_fallthru
        _
    $region6: #{augparam_forward.1} parent=1 // loop_footer
      %s19 = sadd.s32 1, %s15
    $region7: #{augparam_forward.1} parent=1 // loop_footer_branch
      %14 = sbr.rel target = $region3
    $region8: #{augparam_forward.1} parent=1 // loop_exit
      _
    %692 = vsyncpa [#allocation3], 1
    %s693 = scalar_lea.sflag [#allocation3], 1
    %694 = vsyncpa %s693, 1

</llo_original>
